<compile_context>
chip_gen: v5e
topology: v5e:2x2
jax: 0.10.0
libtpu: 0.0.40
codegen_flags: <defaults>
</compile_context>

<pallas_src>
import functools

import jax
import jax.numpy as jnp
from jax.experimental import pallas as pl
from jax.experimental.pallas import tpu as pltpu


def _conv_stats_kernel(xp_ref, w_ref, b_ref, s_ref, ss_ref, *, ksize, dilation, l_out):
    # xp_ref: (1, Cin, L + 2*pad)  zero-padded input for one batch element (NCL layout)
    # w_ref : (K, 2*Cout, Cin)     both branches' conv weights, tap-major
    # b_ref : (2*Cout, 1)          both branches' conv bias
    # s_ref : (1, 2*Cout, 1)       per-batch partial sum over L        (no revisit -> parallel grid)
    # ss_ref: (1, 2*Cout, 1)       per-batch partial sum of squares over L
    c2 = w_ref.shape[1]

    acc = jnp.zeros((c2, l_out), jnp.float32)
    for k in range(ksize):  # static unroll over taps
        xk = xp_ref[0, :, pl.ds(k * dilation, l_out)]          # (Cin, Lout), L on lanes
        acc = acc + jnp.dot(w_ref[k], xk, preferred_element_type=jnp.float32)
    acc = acc + b_ref[...]

    s_ref[0] = jnp.sum(acc, axis=1, keepdims=True)
    ss_ref[0] = jnp.sum(acc * acc, axis=1, keepdims=True)


def _conv_bn_gate_kernel(xp_ref, w_ref, b_ref, scale_ref, shift_ref, o_ref,
                         *, ksize, dilation, l_out, cout):
    # Recompute the conv (cheap / mem-bound), apply folded BN affine, then tanh * sigmoid.
    # o_ref: (1, Cout, Lout) directly in NCL layout.
    c2 = w_ref.shape[1]

    acc = jnp.zeros((c2, l_out), jnp.float32)
    for k in range(ksize):
        xk = xp_ref[0, :, pl.ds(k * dilation, l_out)]
        acc = acc + jnp.dot(w_ref[k], xk, preferred_element_type=jnp.float32)

    z = (acc + b_ref[...]) * scale_ref[...] + shift_ref[...]   # (2*Cout, Lout)
    z_tanh = z[:cout, :]
    z_gate = z[cout:, :]
    gate = 1.0 / (1.0 + jnp.exp(-z_gate))
    o_ref[0] = (jnp.tanh(z_tanh) * gate).astype(o_ref.dtype)


def gated_conv(x, w_t, b_t, g_t, be_t, w_g, b_g, g_g, be_g,
               *, dilation=1, padding=True, eps=1e-5):
    """GatedConv forward.

    x: (N, Cin, L) float32, NCL (PyTorch Conv1d layout).
    w_t/w_g: (Cout, Cin, K) conv / conv_gate weights; b_*, g_*, be_*: (Cout,) bias, BN gamma, BN beta.
    Returns (N, Cout, Lout) float32 in NCL layout.
    """
    n, cin, length = x.shape
    cout, _, ksize = w_t.shape
    c2 = 2 * cout
    # Matches the PyTorch module: padding = (kernel_size - 1) // 2 (intentionally ignores dilation).
    pad = (ksize - 1) // 2 if padding else 0
    l_out = length + 2 * pad - dilation * (ksize - 1)
    lp = length + 2 * pad

    xf = x.astype(jnp.float32)
    xp = jnp.pad(xf, ((0, 0), (0, 0), (pad, pad))) if pad > 0 else xf

    # Stack the two branches along output channels; tap-major weight layout (K, 2*Cout, Cin).
    w_comb = jnp.concatenate([w_t, w_g], axis=0).astype(jnp.float32)   # (2*Cout, Cin, K)
    w3 = jnp.transpose(w_comb, (2, 0, 1))                              # (K, 2*Cout, Cin)
    b2 = jnp.concatenate([b_t, b_g]).astype(jnp.float32).reshape(c2, 1)
    gamma2 = jnp.concatenate([g_t, g_g]).astype(jnp.float32).reshape(c2, 1)
    beta2 = jnp.concatenate([be_t, be_g]).astype(jnp.float32).reshape(c2, 1)

    cparams = pltpu.CompilerParams(
        dimension_semantics=("parallel",),           # per-batch partials -> safe to shard (v7x megacore)
        vmem_limit_bytes=48 * 1024 * 1024,           # explicit scoped-VMEM limit (safe on v5e/v6e/v7x)
    )

    # --- pass 1: conv (both branches) + per-batch per-channel sum / sum-of-squares ---
    s, ss = pl.pallas_call(
        functools.partial(_conv_stats_kernel, ksize=ksize, dilation=dilation, l_out=l_out),
        out_shape=(
            jax.ShapeDtypeStruct((n, c2, 1), jnp.float32),
            jax.ShapeDtypeStruct((n, c2, 1), jnp.float32),
        ),
        grid_spec=pltpu.PrefetchScalarGridSpec(
            num_scalar_prefetch=0,
            grid=(n,),
            in_specs=[
                pl.BlockSpec((1, cin, lp), lambda i: (i, 0, 0)),
                pl.BlockSpec((ksize, c2, cin), lambda i: (0, 0, 0)),
                pl.BlockSpec((c2, 1), lambda i: (0, 0)),
            ],
            out_specs=(
                pl.BlockSpec((1, c2, 1), lambda i: (i, 0, 0)),
                pl.BlockSpec((1, c2, 1), lambda i: (i, 0, 0)),
            ),
        ),
        compiler_params=cparams,
    )(xp, w3, b2)

    # --- tiny JAX glue: reduce per-batch partials, fold BN into per-channel scale/shift ---
    count = jnp.float32(n * l_out)
    mean = jnp.sum(s, axis=0) / count                                  # (2*Cout, 1)
    var = jnp.maximum(jnp.sum(ss, axis=0) / count - mean * mean, 0.0)  # biased var; clamp guards cancellation
    inv = jax.lax.rsqrt(var + eps)
    scale = gamma2 * inv                                               # (2*Cout, 1)
    shift = beta2 - gamma2 * mean * inv                                # (2*Cout, 1)

    # --- pass 2: recompute conv, fused BN-affine + tanh * sigmoid gating, NCL output ---
    out = pl.pallas_call(
        functools.partial(_conv_bn_gate_kernel, ksize=ksize, dilation=dilation,
                          l_out=l_out, cout=cout),
        out_shape=jax.ShapeDtypeStruct((n, cout, l_out), jnp.float32),
        grid_spec=pltpu.PrefetchScalarGridSpec(
            num_scalar_prefetch=0,
            grid=(n,),
            in_specs=[
                pl.BlockSpec((1, cin, lp), lambda i: (i, 0, 0)),
                pl.BlockSpec((ksize, c2, cin), lambda i: (0, 0, 0)),
                pl.BlockSpec((c2, 1), lambda i: (0, 0)),
                pl.BlockSpec((c2, 1), lambda i: (0, 0)),
                pl.BlockSpec((c2, 1), lambda i: (0, 0)),
            ],
            out_specs=pl.BlockSpec((1, cout, l_out), lambda i: (i, 0, 0)),
        ),
        compiler_params=cparams,
    )(xp, w3, b2, scale, shift)

    return out


def _reference_forward(x, w_t, b_t, g_t, be_t, w_g, b_g, g_g, be_g,
                       *, dilation=1, padding=True, eps=1e-5):
    """Pure-JAX reference mirroring GatedConv: (Conv1d+BN(train)+Tanh) * (Conv1d+BN(train)+Sigmoid)."""
    ksize = w_t.shape[-1]
    pad = (ksize - 1) // 2 if padding else 0

    def branch(w, b, g, be, act):
        y = jax.lax.conv_general_dilated(
            x, w, window_strides=(1,), padding=[(pad, pad)],
            rhs_dilation=(dilation,), dimension_numbers=("NCH", "OIH", "NCH"),
            precision=jax.lax.Precision.HIGHEST)
        y = y + b[None, :, None]
        mean = y.mean(axis=(0, 2))
        var = ((y - mean[None, :, None]) ** 2).mean(axis=(0, 2))
        yn = (y - mean[None, :, None]) * jax.lax.rsqrt(var + eps)[None, :, None]
        return act(g[None, :, None] * yn + be[None, :, None])

    return branch(w_t, b_t, g_t, be_t, jnp.tanh) * branch(w_g, b_g, g_g, be_g, jax.nn.sigmoid)


if __name__ == "__main__":
    key = jax.random.PRNGKey(0)
    keys = jax.random.split(key, 9)

    N, C_IN, C_OUT, L, K = 2, 4, 8, 16, 3

    x = jax.random.normal(keys[0], (N, C_IN, L), dtype=jnp.float32)
    w_t = jax.random.normal(keys[1], (C_OUT, C_IN, K), dtype=jnp.float32) * 0.2
    b_t = jax.random.normal(keys[2], (C_OUT,), dtype=jnp.float32) * 0.1
    g_t = 1.0 + 0.1 * jax.random.normal(keys[3], (C_OUT,), dtype=jnp.float32)
    be_t = 0.1 * jax.random.normal(keys[4], (C_OUT,), dtype=jnp.float32)
    w_g = jax.random.normal(keys[5], (C_OUT, C_IN, K), dtype=jnp.float32) * 0.2
    b_g = jax.random.normal(keys[6], (C_OUT,), dtype=jnp.float32) * 0.1
    g_g = 1.0 + 0.1 * jax.random.normal(keys[7], (C_OUT,), dtype=jnp.float32)
    be_g = 0.1 * jax.random.normal(keys[8], (C_OUT,), dtype=jnp.float32)

    out = gated_conv(x, w_t, b_t, g_t, be_t, w_g, b_g, g_g, be_g, dilation=1, padding=True)
    out = jax.block_until_ready(out)

    ref = _reference_forward(x, w_t, b_t, g_t, be_t, w_g, b_g, g_g, be_g, dilation=1, padding=True)
    assert out.shape == (N, C_OUT, L), out.shape
    max_err = float(jnp.max(jnp.abs(out - ref)))
    assert jnp.allclose(out, ref, atol=2e-4, rtol=2e-4), max_err

    print("KERNEL_OK")
</pallas_src>

<mosaic_0001>
module attributes {stable_mosaic.version = 11 : i64} {
  func.func @_conv_stats_kernel(%arg0: i32, %arg1: memref<1x4x18xf32, #tpu.memory_space<vmem>>, %arg2: memref<3x16x4xf32, #tpu.memory_space<vmem>>, %arg3: memref<16x1xf32, #tpu.memory_space<vmem>>, %arg4: memref<1x16x1xf32, #tpu.memory_space<vmem>>, %arg5: memref<1x16x1xf32, #tpu.memory_space<vmem>>) attributes {dimension_semantics = [#tpu.dimension_semantics<parallel>], iteration_bounds = array<i64: 2>, scalar_prefetch = 0 : i64, scratch_operands = 0 : i64, tpu.core_type = #tpu.core_type<tc>, window_params = [{transform_indices = @transform_0, window_bounds = array<i64: 1, 4, 18>}, {pipeline_mode = #tpu.pipeline_mode<synchronous>, transform_indices = @transform_1, window_bounds = array<i64: 3, 16, 4>}, {pipeline_mode = #tpu.pipeline_mode<synchronous>, transform_indices = @transform_2, window_bounds = array<i64: 16, 1>}, {transform_indices = @transform_3, window_bounds = array<i64: 1, 16, 1>}, {transform_indices = @transform_4, window_bounds = array<i64: 1, 16, 1>}]} {
    %cst = arith.constant 0.000000e+00 : f32
    %0 = vector.broadcast %cst : f32 to vector<16x16xf32>
    %c0 = arith.constant 0 : index
    %c0_0 = arith.constant 0 : index
    %c0_1 = arith.constant 0 : index
    %1 = vector.load %arg1[%c0, %c0_0, %c0_1] : memref<1x4x18xf32, #tpu.memory_space<vmem>>, vector<1x4x16xf32>
    %2 = vector.shape_cast %1 : vector<1x4x16xf32> to vector<4x16xf32>
    %c0_2 = arith.constant 0 : index
    %c0_3 = arith.constant 0 : index
    %c0_4 = arith.constant 0 : index
    %3 = vector.load %arg2[%c0_2, %c0_3, %c0_4] : memref<3x16x4xf32, #tpu.memory_space<vmem>>, vector<1x16x4xf32>
    %4 = vector.shape_cast %3 : vector<1x16x4xf32> to vector<16x4xf32>
    %cst_5 = arith.constant dense<0.000000e+00> : vector<16x16xf32>
    %5 = tpu.matmul %4, %2, %cst_5 {dimension_numbers = #tpu.dot_dimension_numbers<[1], [0], [0], [1], [0, 0, 1, 1], [], []>} : vector<16x4xf32>, vector<4x16xf32>, vector<16x16xf32> -> vector<16x16xf32>
    %6 = arith.addf %0, %5 : vector<16x16xf32>
    %c0_6 = arith.constant 0 : index
    %c0_7 = arith.constant 0 : index
    %c1 = arith.constant 1 : index
    %7 = vector.load %arg1[%c0_6, %c0_7, %c1] : memref<1x4x18xf32, #tpu.memory_space<vmem>>, vector<1x4x16xf32>
    %8 = vector.shape_cast %7 : vector<1x4x16xf32> to vector<4x16xf32>
    %c1_8 = arith.constant 1 : index
    %c0_9 = arith.constant 0 : index
    %c0_10 = arith.constant 0 : index
    %9 = vector.load %arg2[%c1_8, %c0_9, %c0_10] : memref<3x16x4xf32, #tpu.memory_space<vmem>>, vector<1x16x4xf32>
    %10 = vector.shape_cast %9 : vector<1x16x4xf32> to vector<16x4xf32>
    %cst_11 = arith.constant dense<0.000000e+00> : vector<16x16xf32>
    %11 = tpu.matmul %10, %8, %cst_11 {dimension_numbers = #tpu.dot_dimension_numbers<[1], [0], [0], [1], [0, 0, 1, 1], [], []>} : vector<16x4xf32>, vector<4x16xf32>, vector<16x16xf32> -> vector<16x16xf32>
    %12 = arith.addf %6, %11 : vector<16x16xf32>
    %c0_12 = arith.constant 0 : index
    %c0_13 = arith.constant 0 : index
    %c2 = arith.constant 2 : index
    %13 = vector.load %arg1[%c0_12, %c0_13, %c2] : memref<1x4x18xf32, #tpu.memory_space<vmem>>, vector<1x4x16xf32>
    %14 = vector.shape_cast %13 : vector<1x4x16xf32> to vector<4x16xf32>
    %c2_14 = arith.constant 2 : index
    %c0_15 = arith.constant 0 : index
    %c0_16 = arith.constant 0 : index
    %15 = vector.load %arg2[%c2_14, %c0_15, %c0_16] : memref<3x16x4xf32, #tpu.memory_space<vmem>>, vector<1x16x4xf32>
    %16 = vector.shape_cast %15 : vector<1x16x4xf32> to vector<16x4xf32>
    %cst_17 = arith.constant dense<0.000000e+00> : vector<16x16xf32>
    %17 = tpu.matmul %16, %14, %cst_17 {dimension_numbers = #tpu.dot_dimension_numbers<[1], [0], [0], [1], [0, 0, 1, 1], [], []>} : vector<16x4xf32>, vector<4x16xf32>, vector<16x16xf32> -> vector<16x16xf32>
    %18 = arith.addf %12, %17 : vector<16x16xf32>
    %c0_18 = arith.constant 0 : index
    %c0_19 = arith.constant 0 : index
    %19 = vector.load %arg3[%c0_18, %c0_19] : memref<16x1xf32, #tpu.memory_space<vmem>>, vector<16x1xf32>
    %20 = vector.broadcast %19 : vector<16x1xf32> to vector<16x16xf32>
    %21 = arith.addf %18, %20 : vector<16x16xf32>
    %cst_20 = arith.constant dense<0.000000e+00> : vector<16xf32>
    %22 = vector.multi_reduction <add>, %21, %cst_20 [1] : vector<16x16xf32> to vector<16xf32>
    %23 = vector.shape_cast %22 : vector<16xf32> to vector<16x1xf32>
    %c0_21 = arith.constant 0 : index
    %c0_22 = arith.constant 0 : index
    %c0_23 = arith.constant 0 : index
    %24 = vector.load %arg4[%c0_21, %c0_22, %c0_23] : memref<1x16x1xf32, #tpu.memory_space<vmem>>, vector<1x16x1xf32>
    %25 = vector.shape_cast %24 : vector<1x16x1xf32> to vector<16x1xf32>
    %26 = vector.shape_cast %23 : vector<16x1xf32> to vector<1x16x1xf32>
    tpu.vector_store %arg4[%c0_21, %c0_22, %c0_23], %26 {strides = array<i32>} : memref<1x16x1xf32, #tpu.memory_space<vmem>>, vector<1x16x1xf32>,
    %27 = arith.mulf %21, %21 : vector<16x16xf32>
    %cst_24 = arith.constant dense<0.000000e+00> : vector<16xf32>
    %28 = vector.multi_reduction <add>, %27, %cst_24 [1] : vector<16x16xf32> to vector<16xf32>
    %29 = vector.shape_cast %28 : vector<16xf32> to vector<16x1xf32>
    %c0_25 = arith.constant 0 : index
    %c0_26 = arith.constant 0 : index
    %c0_27 = arith.constant 0 : index
    %30 = vector.load %arg5[%c0_25, %c0_26, %c0_27] : memref<1x16x1xf32, #tpu.memory_space<vmem>>, vector<1x16x1xf32>
    %31 = vector.shape_cast %30 : vector<1x16x1xf32> to vector<16x1xf32>
    %32 = vector.shape_cast %29 : vector<16x1xf32> to vector<1x16x1xf32>
    tpu.vector_store %arg5[%c0_25, %c0_26, %c0_27], %32 {strides = array<i32>} : memref<1x16x1xf32, #tpu.memory_space<vmem>>, vector<1x16x1xf32>,
    return
  }
  func.func @transform_0(%arg0: i32) -> (i32, i32, i32) {
    %c0_i32 = arith.constant 0 : i32
    %c0_i32_0 = arith.constant 0 : i32
    %c0_i32_1 = arith.constant 0 : i32
    return %arg0, %c0_i32, %c0_i32_0 : i32, i32, i32
  }
  func.func @transform_1(%arg0: i32) -> (i32, i32, i32) {
    %c0_i32 = arith.constant 0 : i32
    %c0_i32_0 = arith.constant 0 : i32
    %c0_i32_1 = arith.constant 0 : i32
    %c0_i32_2 = arith.constant 0 : i32
    return %c0_i32, %c0_i32_0, %c0_i32_1 : i32, i32, i32
  }
  func.func @transform_2(%arg0: i32) -> (i32, i32) {
    %c0_i32 = arith.constant 0 : i32
    %c0_i32_0 = arith.constant 0 : i32
    %c0_i32_1 = arith.constant 0 : i32
    return %c0_i32, %c0_i32_0 : i32, i32
  }
  func.func @transform_3(%arg0: i32) -> (i32, i32, i32) {
    %c0_i32 = arith.constant 0 : i32
    %c0_i32_0 = arith.constant 0 : i32
    %c0_i32_1 = arith.constant 0 : i32
    return %arg0, %c0_i32, %c0_i32_0 : i32, i32, i32
  }
  func.func @transform_4(%arg0: i32) -> (i32, i32, i32) {
    %c0_i32 = arith.constant 0 : i32
    %c0_i32_0 = arith.constant 0 : i32
    %c0_i32_1 = arith.constant 0 : i32
    return %arg0, %c0_i32, %c0_i32_0 : i32, i32, i32
  }
}

</mosaic_0001>

<llo_original>
// kernel: tpu_custom_call.1
$region0: #{tpu_custom_call.1}
  #allocation0 [shape = 'u32[]', space=smem, size = 0x4, offset = 0x4, fixed_abs, tag = 'smem constant byte address 0x4 - core index']
  #allocation1 [shape = 'u32[72,128]{1,0:T(1,128)}', space=vmem, size = 0x9000, scoped, tag = 'internal scratch']
  %s0 = inlined_call_operand.vmem [shape: f32[2,4,18], index: 0, kind: input, shape index: {}]
  %s1 = inlined_call_operand.vmem [shape: f32[3,16,4], index: 1, kind: input, shape index: {}]
  %s2 = inlined_call_operand.vmem [shape: f32[16,1], index: 2, kind: input, shape index: {}]
  %s3 = inlined_call_operand.vmem [shape: f32[2,16,1], index: 3, kind: output, shape index: {0}]
  %s4 = inlined_call_operand.vmem [shape: f32[2,16,1], index: 4, kind: output, shape index: {1}]
  %5 = xla_tuple %s3, %s4
  %s6 = sld [smem:[#allocation0]]
  $region53: #{tpu_custom_call.1} parent=0
    _
  %s8 = ssub.s32 1, %s6
  %s9 = scalar_select 0, %s8, %s6
  loop: start=0, step=1, limit=4
  $region2: #{tpu_custom_call.1} parent=0 // loop_pre_header
    _
  $region3: #{tpu_custom_call.1} parent=0 // loop_header
    %s11 = sphi 0, %s15
    %p12 = scmp.ge.s32.totalorder %s11, 4
    %s21 = sphi 0, %s23
    %s24 = sphi 0, %s21
    %s25 = sphi 0, %s24
    %s41 = sphi 0, %s25
    %s45 = sphi 0, %s45
    %s47 = sphi 0, %s45
    %s48 = sphi 0, %s47
    %s62 = sphi 0, %s48
    %s66 = sphi 0, %s66
    %s68 = sphi 0, %s66
    %s69 = sphi 0, %s68
    %s83 = sphi 0, %s69
    %s89 = sphi 0, %s91
    %s92 = sphi 0, %s89
    %s93 = sphi 0, %s92
    %s109 = sphi 0, %s93
    %s115 = sphi 0, %s117
    %s118 = sphi 0, %s115
    %s119 = sphi 0, %s118
    %s135 = sphi 0, %s119
  $region4: #{tpu_custom_call.1} parent=0 // loop_header_branch
    %14 = sbr.rel (%p12) target = $region8
  $region5: #{tpu_custom_call.1} parent=0 // loop_body
    %s16 = ssub.s32 %s11, 1
    %s17 = ssub.s32 %s11, 2
    %s18 = sadd.s32 %s11, 1
    %s19 = ssub.s32 %s11, %s18
    %p20 = scmp.eq.s32.totalorder %s19, 0
    %s22 = sadd.s32 %s21, 1
    %s23 = scalar_select %p20, %s21, %s22
    %p26 = pneg %p20
    %p27 = scmp.eq.s32.totalorder %s11, 1
    %p28 = por %p26, %p27
    %p29 = scmp.ne.s32.totalorder %s21, %s24
    %p30 = scmp.eq.s32.totalorder %s11, 0
    %p31 = por %p29, %p30
    %p32 = scmp.ne.s32.totalorder %s21, %s24
    %p33 = scmp.eq.s32.totalorder %s16, 1
    %p34 = por %p32, %p33
    %p35 = scmp.ne.s32.totalorder %s24, %s25
    %p36 = scmp.eq.s32.totalorder %s16, 0
    %p37 = por %p35, %p36
    %p38 = scmp.ne.s32.totalorder %s24, %s25
    %p39 = scmp.eq.s32.totalorder %s17, 1
    %p40 = por %p38, %p39
    %p42 = scmp.ne.s32.totalorder %s25, %s41
    %p43 = scmp.eq.s32.totalorder %s17, 0
    %p44 = por %p42, %p43
    %s46 = sadd.s32 %s45, 1
    %p49 = scmp.eq.s32.totalorder %s11, 1
    %p50 = scmp.ne.s32.totalorder %s45, %s47
    %p51 = scmp.eq.s32.totalorder %s11, 0
    %p52 = por %p50, %p51
    %p53 = scmp.ne.s32.totalorder %s45, %s47
    %p54 = scmp.eq.s32.totalorder %s16, 1
    %p55 = por %p53, %p54
    %p56 = scmp.ne.s32.totalorder %s47, %s48
    %p57 = scmp.eq.s32.totalorder %s16, 0
    %p58 = por %p56, %p57
    %p59 = scmp.ne.s32.totalorder %s47, %s48
    %p60 = scmp.eq.s32.totalorder %s17, 1
    %p61 = por %p59, %p60
    %p63 = scmp.ne.s32.totalorder %s48, %s62
    %p64 = scmp.eq.s32.totalorder %s17, 0
    %p65 = por %p63, %p64
    %s67 = sadd.s32 %s66, 1
    %p70 = scmp.eq.s32.totalorder %s11, 1
    %p71 = scmp.ne.s32.totalorder %s66, %s68
    %p72 = scmp.eq.s32.totalorder %s11, 0
    %p73 = por %p71, %p72
    %p74 = scmp.ne.s32.totalorder %s66, %s68
    %p75 = scmp.eq.s32.totalorder %s16, 1
    %p76 = por %p74, %p75
    %p77 = scmp.ne.s32.totalorder %s68, %s69
    %p78 = scmp.eq.s32.totalorder %s16, 0
    %p79 = por %p77, %p78
    %p80 = scmp.ne.s32.totalorder %s68, %s69
    %p81 = scmp.eq.s32.totalorder %s17, 1
    %p82 = por %p80, %p81
    %p84 = scmp.ne.s32.totalorder %s69, %s83
    %p85 = scmp.eq.s32.totalorder %s17, 0
    %p86 = por %p84, %p85
    %s87 = ssub.s32 %s11, %s18
    %p88 = scmp.eq.s32.totalorder %s87, 0
    %s90 = sadd.s32 %s89, 1
    %s91 = scalar_select %p88, %s89, %s90
    %p94 = pneg %p88
    %p95 = scmp.eq.s32.totalorder %s11, 1
    %p96 = por %p94, %p95
    %p97 = scmp.ne.s32.totalorder %s89, %s92
    %p98 = scmp.eq.s32.totalorder %s11, 0
    %p99 = por %p97, %p98
    %p100 = scmp.ne.s32.totalorder %s89, %s92
    %p101 = scmp.eq.s32.totalorder %s16, 1
    %p102 = por %p100, %p101
    %p103 = scmp.ne.s32.totalorder %s92, %s93
    %p104 = scmp.eq.s32.totalorder %s16, 0
    %p105 = por %p103, %p104
    %p106 = scmp.ne.s32.totalorder %s92, %s93
    %p107 = scmp.eq.s32.totalorder %s17, 1
    %p108 = por %p106, %p107
    %p110 = scmp.ne.s32.totalorder %s93, %s109
    %p111 = scmp.eq.s32.totalorder %s17, 0
    %p112 = por %p110, %p111
    %s113 = ssub.s32 %s11, %s18
    %p114 = scmp.eq.s32.totalorder %s113, 0
    %s116 = sadd.s32 %s115, 1
    %s117 = scalar_select %p114, %s115, %s116
    %p120 = pneg %p114
    %p121 = scmp.eq.s32.totalorder %s11, 1
    %p122 = por %p120, %p121
    %p123 = scmp.ne.s32.totalorder %s115, %s118
    %p124 = scmp.eq.s32.totalorder %s11, 0
    %p125 = por %p123, %p124
    %p126 = scmp.ne.s32.totalorder %s115, %s118
    %p127 = scmp.eq.s32.totalorder %s16, 1
    %p128 = por %p126, %p127
    %p129 = scmp.ne.s32.totalorder %s118, %s119
    %p130 = scmp.eq.s32.totalorder %s16, 0
    %p131 = por %p129, %p130
    %p132 = scmp.ne.s32.totalorder %s118, %s119
    %p133 = scmp.eq.s32.totalorder %s17, 1
    %p134 = por %p132, %p133
    %p136 = scmp.ne.s32.totalorder %s119, %s135
    %p137 = scmp.eq.s32.totalorder %s17, 0
    %p138 = por %p136, %p137
    %p139 = scmp.le.s32.totalorder 1, %s11
    %p140 = scmp.lt.s32.totalorder %s11, 3
    %p141 = pnand %p139, %p140
    %p142 = pneg %p141
    // Predicated region
    $region9: #{tpu_custom_call.1} parent=5 // pred_check
      _
    $region10: #{tpu_custom_call.1} parent=5 // pred_check_branch
      %144 = sbr.rel (%p141) target = $region12
    $region11: #{tpu_custom_call.1} parent=5 // pred_region
      %s145 = ssub.s32 %s11, 1
      // Predicated region
      $region13: #{tpu_custom_call.1} parent=11 // pred_check
        %p146 = pneg %p58
      $region14: #{tpu_custom_call.1} parent=11 // pred_check_branch
        %148 = sbr.rel (%p146) target = $region16
      $region15: #{tpu_custom_call.1} parent=11 // pred_region
        _
      $region16: #{tpu_custom_call.1} parent=11 // pred_fallthru
        _
      // Predicated region
      $region17: #{tpu_custom_call.1} parent=11 // pred_check
        %p149 = pneg %p79
      $region18: #{tpu_custom_call.1} parent=11 // pred_check_branch
        %151 = sbr.rel (%p149) target = $region20
      $region19: #{tpu_custom_call.1} parent=11 // pred_region
        _
      $region20: #{tpu_custom_call.1} parent=11 // pred_fallthru
        _
    $region12: #{tpu_custom_call.1} parent=5 // pred_fallthru
      _
    %p152 = scmp.lt.s32.totalorder %s11, 2
    // Predicated region
    $region21: #{tpu_custom_call.1} parent=5 // pred_check
      %p153 = pneg %p152
    $region22: #{tpu_custom_call.1} parent=5 // pred_check_branch
      %155 = sbr.rel (%p153) target = $region24
    $region23: #{tpu_custom_call.1} parent=5 // pred_region
      // Predicated region
      $region25: #{tpu_custom_call.1} parent=23 // pred_check
        %p156 = pneg %p31
      $region26: #{tpu_custom_call.1} parent=23 // pred_check_branch
        %158 = sbr.rel (%p156) target = $region28
      $region27: #{tpu_custom_call.1} parent=23 // pred_region
        %p159 = scmp.lt.s32.totalorder %s11, 1
        %s160 = scalar_select %p159, %s11, 1
        %s161 = smul.addr %s160, 4
        %s162 = scalar_lea.vmem %s0, %s161
      $region28: #{tpu_custom_call.1} parent=23 // pred_fallthru
        _
    $region24: #{tpu_custom_call.1} parent=5 // pred_fallthru
      _
    %p163 = scmp.le.s32.totalorder 1, %s11
    %p164 = scmp.lt.s32.totalorder %s11, 3
    %p165 = pnand %p163, %p164
    %p166 = pneg %p165
    // Predicated region
    $region29: #{tpu_custom_call.1} parent=5 // pred_check
      _
    $region30: #{tpu_custom_call.1} parent=5 // pred_check_branch
      %168 = sbr.rel (%p165) target = $region32
    $region31: #{tpu_custom_call.1} parent=5 // pred_region
      %s169 = ssub.s32 %s11, 1
      %p170 = scmp.lt.s32.totalorder %s16, 1
      %s171 = scalar_select %p170, %s16, 1
      %s172 = smul.addr %s171, 4
      %s173 = scalar_lea.vmem %s0, %s172
      %p174 = pneg %p37
      %p175 = pneg %p34
      %p176 = pneg %p58
      %p177 = pneg %p55
      %p178 = pneg %p79
      %p179 = pneg %p76
      %p180 = pneg %p105
      %p181 = pneg %p102
      %p182 = scmp.lt.s32.totalorder %s16, 1
      %s183 = scalar_select %p182, %s16, 1
      %s184 = smul.addr %s183, 2
      %s185 = smul.addr %s184, 8
      %s186 = scalar_lea.vmem %s3, %s185
      %p187 = pneg %p131
      %p188 = pneg %p128
      %p189 = scmp.lt.s32.totalorder %s16, 1
      %s190 = scalar_select %p189, %s16, 1
      %s191 = smul.addr %s190, 2
      %s192 = smul.addr %s191, 8
      %s193 = scalar_lea.vmem %s4, %s192
      %p194 = scmp.lt.s32.totalorder %s16, 1
      %s195 = scalar_select %p194, %s16, 1
      %s196 = smul.addr %s195, 4
      %s197 = scalar_lea.vmem %s0, %s196
      %p198 = scmp.lt.s32.totalorder %s16, 1
      %s199 = scalar_select %p198, %s16, 1
      %s200 = smul.addr %s199, 2
      %s201 = smul.addr %s200, 8
      %s202 = scalar_lea.vmem %s3, %s201
      %p203 = scmp.lt.s32.totalorder %s16, 1
      %s204 = scalar_select %p203, %s16, 1
      %s205 = smul.addr %s204, 2
      %s206 = smul.addr %s205, 8
      %s207 = scalar_lea.vmem %s4, %s206
      %v208 = vld [vmem:[%s197] sm:$0xf]
      %v209 = vld [vmem:[%s1] sm:$0xff]
      %v210 = vld [vmem:[%s1 + $0x8] sm:$0xff]
      %s211 = scalar_lea.vmem %s1, 16
      %v212 = vld [vmem:[%s211] sm:$0xff]
      %v213 = vld [vmem:[%s211 + $0x8] sm:$0xff]
      %215 = vrot.lane.b32.xlu0 %v208, 127
      %v216 = vpop.permute.xlu0 %215
      %vm217 = vcmask 31744
      %v219 = vsel %vm217, %v212, 0
      %v222 = vsel %vm217, %v213, 0
      %vm224 = vcmask 1043456
      %v225 = vsel %vm224, %v216, 0
      %227 = vmatpush.msra.mxu0 0.0
      %228 = vmatpush.msra.mxu0 0.0
      %229 = vmatpush.msra.mxu0 0.0
      %230 = vmatpush.msra.mxu0 0.0
      %231 = vmatpush.msra.mxu0 0.0
      %232 = vmatpush.msra.mxu0 0.0
      %233 = vmatpush.msra.mxu0 0.0
      %234 = vmatpush.msra.mxu0 0.0
      %235 = vmatpush.msra.mxu0 0.0
      %236 = vmatpush.msra.mxu0 0.0
      %237 = vmatpush.msra.mxu0 0.0
      %238 = vmatpush.msra.mxu0 0.0
      %239 = vmatpush.msra.mxu0 0.0
      %240 = vmatpush.msra.mxu0 0.0
      %241 = vmatpush.msra.mxu0 0.0
      %242 = vmatpush.msra.mxu0 %v225
      %243 = vmatmul.f32.gmra.mxu0 %v219
      %v244 = vpop.f32.mrf.mxu0
      %v245 = vadd.f32 0.0, %v244
      %246 = vmatmul.f32.gmra.mxu0 %v222
      %v247 = vpop.f32.mrf.mxu0
      %v248 = vadd.f32 0.0, %v247
      %249 = vdwg.mxu0
      %v251 = vsel %vm217, %v209, 0
      %v254 = vsel %vm217, %v210, 0
      %v256 = vsel %vm224, %v208, 0
      %258 = vmatpush.msra.mxu0 0.0
      %259 = vmatpush.msra.mxu0 0.0
      %260 = vmatpush.msra.mxu0 0.0
      %261 = vmatpush.msra.mxu0 0.0
      %262 = vmatpush.msra.mxu0 0.0
      %263 = vmatpush.msra.mxu0 0.0
      %264 = vmatpush.msra.mxu0 0.0
      %265 = vmatpush.msra.mxu0 0.0
      %266 = vmatpush.msra.mxu0 0.0
      %267 = vmatpush.msra.mxu0 0.0
      %268 = vmatpush.msra.mxu0 0.0
      %269 = vmatpush.msra.mxu0 0.0
      %270 = vmatpush.msra.mxu0 0.0
      %271 = vmatpush.msra.mxu0 0.0
      %272 = vmatpush.msra.mxu0 0.0
      %273 = vmatpush.msra.mxu0 %v256
      %274 = vmatmul.f32.gmra.mxu0 %v251
      %v275 = vpop.f32.mrf.mxu0
      %v276 = vadd.f32 %v245, %v275
      %277 = vmatmul.f32.gmra.mxu0 %v254
      %v278 = vpop.f32.mrf.mxu0
      %v279 = vadd.f32 %v248, %v278
      %280 = vdwg.mxu0
      %s281 = scalar_lea.vmem %s1, 32
      %v282 = vld [vmem:[%s281] sm:$0xff]
      %v283 = vld [vmem:[%s281 + $0x8] sm:$0xff]
      %284 = vrot.lane.b32.xlu0 %v208, 126
      %v285 = vpop.permute.xlu0 %284
      %v287 = vsel %vm217, %v282, 0
      %v290 = vsel %vm217, %v283, 0
      %v292 = vsel %vm224, %v285, 0
      %294 = vmatpush.msra.mxu0 0.0
      %295 = vmatpush.msra.mxu0 0.0
      %296 = vmatpush.msra.mxu0 0.0
      %297 = vmatpush.msra.mxu0 0.0
      %298 = vmatpush.msra.mxu0 0.0
      %299 = vmatpush.msra.mxu0 0.0
      %300 = vmatpush.msra.mxu0 0.0
      %301 = vmatpush.msra.mxu0 0.0
      %302 = vmatpush.msra.mxu0 0.0
      %303 = vmatpush.msra.mxu0 0.0
      %304 = vmatpush.msra.mxu0 0.0
      %305 = vmatpush.msra.mxu0 0.0
      %306 = vmatpush.msra.mxu0 0.0
      %307 = vmatpush.msra.mxu0 0.0
      %308 = vmatpush.msra.mxu0 0.0
      %309 = vmatpush.msra.mxu0 %v292
      %310 = vmatmul.f32.gmra.mxu0 %v287
      %v311 = vpop.f32.mrf.mxu0
      %v312 = vadd.f32 0.0, %v311
      %313 = vmatmul.f32.gmra.mxu0 %v290
      %v314 = vpop.f32.mrf.mxu0
      %v315 = vadd.f32 0.0, %v314
      %316 = vdwg.mxu0
      %v317 = vadd.f32 %v276, %v312
      %v318 = vadd.f32 %v279, %v315
      %v319 = vld [vmem:[%s2] sm:$0xff]
      %v320 = vld [vmem:[%s2 + $0x8] sm:$0xff]
      %322 = vset.pattern.permute.xlu0 0
      %323 = vperm.xlu0 %322, %v319
      %v324 = vpop.permute.xlu0 %323
      %327 = vset.pattern.permute.xlu0 0
      %328 = vperm.xlu0 %327, %v320
      %v329 = vpop.permute.xlu0 %328
      %v331 = vadd.f32 %v317, %v324
      %v332 = vadd.f32 %v318, %v329
      %vm333 = vcmask 130048
      %v334 = vsel %vm333, %v331, 0.0
      %335 = vadd.xlane.f32.xlu0 %v334
      %v336 = vpop.xlane.xlu0 %335
      %v337 = vsel %vm333, %v332, 0.0
      %338 = vadd.xlane.f32.xlu0 %v337
      %v339 = vpop.xlane.xlu0 %338
      %vm340 = vcmask 7168
      %341 = vst.msk [vmem:[%s202] sm:$0xff] %vm340, %v336
      %342 = vst.msk [vmem:[%s202 + $0x8] sm:$0xff] %vm340, %v339
      %v343 = vmul.f32 %v331, %v331
      %v344 = vmul.f32 %v332, %v332
      %v345 = vsel %vm333, %v343, 0.0
      %346 = vadd.xlane.f32.xlu0 %v345
      %v347 = vpop.xlane.xlu0 %346
      %v348 = vsel %vm333, %v344, 0.0
      %349 = vadd.xlane.f32.xlu0 %v348
      %v350 = vpop.xlane.xlu0 %349
      %351 = vst.msk [vmem:[%s207] sm:$0xff] %vm340, %v347
      %352 = vst.msk [vmem:[%s207 + $0x8] sm:$0xff] %vm340, %v350
      %p353 = scmp.lt.s32.totalorder %s16, 1
      %s354 = scalar_select %p353, %s16, 1
      %s355 = smul.addr %s354, 2
      %s356 = smul.addr %s355, 8
      %s357 = scalar_lea.vmem %s3, %s356
      %p358 = scmp.lt.s32.totalorder %s16, 1
      %s359 = scalar_select %p358, %s16, 1
      %s360 = smul.addr %s359, 2
      %s361 = smul.addr %s360, 8
      %s362 = scalar_lea.vmem %s4, %s361
      // Predicated region
      $region33: #{tpu_custom_call.1} parent=31 // pred_check
        %p363 = pneg %p102
      $region34: #{tpu_custom_call.1} parent=31 // pred_check_branch
        %365 = sbr.rel (%p363) target = $region36
      $region35: #{tpu_custom_call.1} parent=31 // pred_region
        _
      $region36: #{tpu_custom_call.1} parent=31 // pred_fallthru
        _
      // Predicated region
      $region37: #{tpu_custom_call.1} parent=31 // pred_check
        %p366 = pneg %p128
      $region38: #{tpu_custom_call.1} parent=31 // pred_check_branch
        %368 = sbr.rel (%p366) target = $region40
      $region39: #{tpu_custom_call.1} parent=31 // pred_region
        _
      $region40: #{tpu_custom_call.1} parent=31 // pred_fallthru
        _
    $region32: #{tpu_custom_call.1} parent=5 // pred_fallthru
      _
    %p369 = scmp.le.s32.totalorder 2, %s11
    // Predicated region
    $region41: #{tpu_custom_call.1} parent=5 // pred_check
      %p370 = pneg %p369
    $region42: #{tpu_custom_call.1} parent=5 // pred_check_branch
      %372 = sbr.rel (%p370) target = $region44
    $region43: #{tpu_custom_call.1} parent=5 // pred_region
      %s373 = ssub.s32 %s11, 2
      // Predicated region
      $region45: #{tpu_custom_call.1} parent=43 // pred_check
        %p374 = pneg %p108
      $region46: #{tpu_custom_call.1} parent=43 // pred_check_branch
        %376 = sbr.rel (%p374) target = $region48
      $region47: #{tpu_custom_call.1} parent=43 // pred_region
        %p377 = scmp.lt.s32.totalorder %s17, 1
        %s378 = scalar_select %p377, %s17, 1
        %s379 = smul.addr %s378, 2
        %s380 = smul.addr %s379, 8
        %s381 = scalar_lea.vmem %s3, %s380
      $region48: #{tpu_custom_call.1} parent=43 // pred_fallthru
        _
      // Predicated region
      $region49: #{tpu_custom_call.1} parent=43 // pred_check
        %p382 = pneg %p134
      $region50: #{tpu_custom_call.1} parent=43 // pred_check_branch
        %384 = sbr.rel (%p382) target = $region52
      $region51: #{tpu_custom_call.1} parent=43 // pred_region
        %p385 = scmp.lt.s32.totalorder %s17, 1
        %s386 = scalar_select %p385, %s17, 1
        %s387 = smul.addr %s386, 2
        %s388 = smul.addr %s387, 8
        %s389 = scalar_lea.vmem %s4, %s388
      $region52: #{tpu_custom_call.1} parent=43 // pred_fallthru
        _
    $region44: #{tpu_custom_call.1} parent=5 // pred_fallthru
      _
  $region6: #{tpu_custom_call.1} parent=0 // loop_footer
    %s15 = sadd.s32 1, %s11
  $region7: #{tpu_custom_call.1} parent=0 // loop_footer_branch
    %10 = sbr.rel target = $region3
  $region8: #{tpu_custom_call.1} parent=0 // loop_exit
    _

</llo_original>
